<compile_context>
chip_gen: v6e
topology: v6e:2x2x1
jax: 0.10.0
libtpu: 0.0.40
codegen_flags: <defaults>
</compile_context>

<pallas_src>
import functools

import jax
import jax.numpy as jnp
from jax.experimental import pallas as pl
from jax.experimental.pallas import tpu as pltpu


_TARGET_BLOCK_BYTES = 2 * 1024 * 1024   # per-block input bytes (past the DMA-efficiency knee)


def _vmem_limit_bytes() -> int:
    # v5e/v6e have 128 MiB physical VMEM (16/32 MiB scoped default); v7x only 64 MiB.
    try:
        cap = int(pltpu.get_tpu_info().vmem_capacity_bytes)
    except Exception:  # pragma: no cover - conservative fallback
        cap = 64 * 1024 * 1024
    return min(cap // 2, 48 * 1024 * 1024)


def _smooth_loss_kernel(x_ref, wrow_ref, o_ref, *, w_len, inv_cd, inv_ch):
    # x_ref   : (B_TILE, D, H*W) input block, native dtype.
    # wrow_ref: (1, 1, H*W - 1) f32; lam^2/cw where a lane-adjacent pair is a
    #           true W-neighbour pair, 0.0 where it straddles two H rows.
    # o_ref   : (1, 1, H*W) f32 resident accumulator (one per outer grid index).
    @pl.when(pl.program_id(1) == 0)
    def _():
        o_ref[...] = jnp.zeros_like(o_ref)

    x = x_ref[...]
    hw = x.shape[2]

    # D-axis differences (axis 1 of the fused (B_TILE, D, H*W) block).
    dd = (x[:, 1:, :] - x[:, :-1, :]).astype(jnp.float32)
    o_ref[...] += jnp.sum(dd * dd, axis=(0, 1), keepdims=True) * inv_cd

    # H-axis differences: elements W apart on the fused (H*W) lane axis.
    dh = (x[:, :, w_len:] - x[:, :, :-w_len]).astype(jnp.float32)
    o_ref[:, :, : hw - w_len] += (
        jnp.sum(dh * dh, axis=(0, 1), keepdims=True) * inv_ch)

    # W-axis differences: adjacent lanes; row-boundary pairs zeroed (and the
    # lam^2/cw scale applied) on the already-reduced row, not per element.
    dw = (x[:, :, 1:] - x[:, :, :-1]).astype(jnp.float32)
    o_ref[:, :, : hw - 1] += (
        jnp.sum(dw * dw, axis=(0, 1), keepdims=True) * wrow_ref[...])


def smooth_loss(x: jax.Array, lambda_weight: float = 1.0,
                _target_block_bytes: int = _TARGET_BLOCK_BYTES) -> jax.Array:
    """Pallas TPU implementation of SmoothLoss.forward for a 5-D NCDHW tensor."""
    N, C, D, H, W = x.shape
    B = N * C
    HW = H * W
    # TODO(synk): degenerate (size-1) D/H/W dims (PyTorch yields NaN via empty
    # mean) and single (D, H*W) slices too large for VMEM (would need D-tiling
    # with a 1-plane halo, especially on v7x's 64 MiB VMEM) are not handled.

    xf = x.reshape(B, D, HW)                      # free row-major reshape (lane-dense)

    itemsize = x.dtype.itemsize
    slice_bytes = D * HW * itemsize
    b_tile = max(1, min(B, _target_block_bytes // slice_bytes))
    if B >= 2:
        # Keep at least 2 blocks so the parallel axis can feed both v7x cores.
        b_tile = min(b_tile, pl.cdiv(B, 2))
    nb = pl.cdiv(B, b_tile)
    n_splits = 2 if nb >= 2 else 1                # one resident accumulator per core
    nbj = pl.cdiv(nb, n_splits)
    b_pad = n_splits * nbj * b_tile
    if b_pad != B:
        # Zero slices contribute exactly 0 to every difference term (diffs never
        # cross the B axis), and the means below use the original counts.
        xf = jnp.pad(xf, ((0, b_pad - B), (0, 0), (0, 0)))

    lam2 = float(lambda_weight) * float(lambda_weight)
    cd = B * (D - 1) * H * W
    ch = B * D * (H - 1) * W
    cw = B * D * H * (W - 1)

    # Per-lane W-term weight row: lam^2/cw on genuine W-neighbour pairs
    # (pair (j, j+1) valid iff j % W != W-1), 0 on H-row boundaries.
    jidx = jnp.arange(HW - 1, dtype=jnp.int32)
    wrow = jnp.where((jidx % W) != (W - 1),
                     jnp.float32(lam2 / cw),
                     jnp.float32(0.0)).reshape(1, 1, HW - 1)

    kernel = functools.partial(_smooth_loss_kernel, w_len=W,
                               inv_cd=lam2 / cd, inv_ch=lam2 / ch)

    out = pl.pallas_call(
        kernel,
        out_shape=jax.ShapeDtypeStruct((n_splits, 1, HW), jnp.float32),
        grid_spec=pltpu.PrefetchScalarGridSpec(
            num_scalar_prefetch=0,
            grid=(n_splits, nbj),
            in_specs=[
                pl.BlockSpec((b_tile, D, HW), lambda i, j: (i * nbj + j, 0, 0)),
                pl.BlockSpec((1, 1, HW - 1), lambda i, j: (0, 0, 0)),
            ],
            out_specs=pl.BlockSpec((1, 1, HW), lambda i, j: (i, 0, 0)),
        ),
        compiler_params=pltpu.CompilerParams(
            # outer axis: independent accumulators (megacore on v7x);
            # inner axis: reduction into the resident output row.
            dimension_semantics=("parallel", "arbitrary"),
            vmem_limit_bytes=_vmem_limit_bytes(),
        ),
        cost_estimate=pl.CostEstimate(
            flops=9 * b_pad * D * HW,             # 3 x (sub + mul + add) per element
            transcendentals=0,
            bytes_accessed=int(b_pad * D * HW * itemsize
                               + (HW - 1) * 4 + n_splits * HW * 4),
        ),
    )(xf, wrow)

    # Tiny final reduction; lam^2 and the three reciprocal counts were already
    # folded into the in-kernel scales, so this is just a sum of 2 rows.
    return jnp.sum(out).astype(x.dtype)


if __name__ == "__main__":
    key = jax.random.PRNGKey(0)
    # Displacement-field-like input: N=2, C=3 (xyz displacement), D=8, H=12, W=16.
    x = jax.random.normal(key, (2, 3, 8, 12, 16), dtype=jnp.float32)
    lam = 0.5

    def ref_loss(t):
        dx = jnp.mean(((t[:, :, 1:, :, :] - t[:, :, :-1, :, :]) * lam) ** 2)
        dy = jnp.mean(((t[:, :, :, 1:, :] - t[:, :, :, :-1, :]) * lam) ** 2)
        dz = jnp.mean(((t[:, :, :, :, 1:] - t[:, :, :, :, :-1]) * lam) ** 2)
        return dx + dy + dz

    # Main path: 2 parallel accumulators, 1 block each.
    ref = ref_loss(x)
    loss = jax.block_until_ready(smooth_loss(x, lambda_weight=lam))
    assert jnp.allclose(loss, ref, rtol=1e-4, atol=1e-6), (float(loss), float(ref))

    # Many-blocks path with a zero-padded tail (B=3 slices -> padded to 4 blocks).
    x2 = x[:1]
    ref2 = ref_loss(x2)
    loss2 = jax.block_until_ready(
        smooth_loss(x2, lambda_weight=lam, _target_block_bytes=1))
    assert jnp.allclose(loss2, ref2, rtol=1e-4, atol=1e-6), (
        float(loss2), float(ref2))

    print("KERNEL_OK")
</pallas_src>

<mosaic_0001>
module attributes {stable_mosaic.version = 11 : i64} {
  func.func @_smooth_loss_kernel(%arg0: i32, %arg1: i32, %arg2: memref<3x8x192xf32, #tpu.memory_space<vmem>>, %arg3: memref<1x1x191xf32, #tpu.memory_space<vmem>>, %arg4: memref<1x1x192xf32, #tpu.memory_space<vmem>>) attributes {dimension_semantics = [#tpu.dimension_semantics<parallel>, #tpu.dimension_semantics<arbitrary>], iteration_bounds = array<i64: 2, 1>, scalar_prefetch = 0 : i64, scratch_operands = 0 : i64, tpu.core_type = #tpu.core_type<tc>, window_params = [{transform_indices = @transform_0, window_bounds = array<i64: 3, 8, 192>}, {pipeline_mode = #tpu.pipeline_mode<synchronous>, transform_indices = @transform_1, window_bounds = array<i64: 1, 1, 191>}, {transform_indices = @transform_2, window_bounds = array<i64: 1, 1, 192>}]} {
    %c0_i32 = arith.constant 0 : i32
    %0 = arith.cmpi eq, %arg1, %c0_i32 : i32
    %1 = arith.extui %0 : i1 to i32
    %c0_i32_0 = arith.constant 0 : i32
    %2 = arith.cmpi ne, %1, %c0_i32_0 : i32
    scf.if %2 {
      %cst_28 = arith.constant 0.000000e+00 : f32
      %37 = vector.broadcast %cst_28 : f32 to vector<1x1x192xf32>
      %c0_29 = arith.constant 0 : index
      %c0_30 = arith.constant 0 : index
      %c0_31 = arith.constant 0 : index
      %38 = vector.load %arg4[%c0_29, %c0_30, %c0_31] : memref<1x1x192xf32, #tpu.memory_space<vmem>>, vector<1x1x192xf32>
      tpu.vector_store %arg4[%c0_29, %c0_30, %c0_31], %37 {strides = array<i32>} : memref<1x1x192xf32, #tpu.memory_space<vmem>>, vector<1x1x192xf32>,
    } else {
    }
    %c0 = arith.constant 0 : index
    %c0_1 = arith.constant 0 : index
    %c0_2 = arith.constant 0 : index
    %3 = vector.load %arg2[%c0, %c0_1, %c0_2] : memref<3x8x192xf32, #tpu.memory_space<vmem>>, vector<3x8x192xf32>
    %4 = vector.extract_strided_slice %3 {offsets = [0, 1, 0], sizes = [3, 7, 192], strides = [1, 1, 1]} : vector<3x8x192xf32> to vector<3x7x192xf32>
    %5 = vector.extract_strided_slice %3 {offsets = [0, 0, 0], sizes = [3, 7, 192], strides = [1, 1, 1]} : vector<3x8x192xf32> to vector<3x7x192xf32>
    %6 = arith.subf %4, %5 : vector<3x7x192xf32>
    %c0_3 = arith.constant 0 : index
    %c0_4 = arith.constant 0 : index
    %c0_5 = arith.constant 0 : index
    %7 = vector.load %arg4[%c0_3, %c0_4, %c0_5] : memref<1x1x192xf32, #tpu.memory_space<vmem>>, vector<1x1x192xf32>
    %8 = arith.mulf %6, %6 : vector<3x7x192xf32>
    %cst = arith.constant dense<0.000000e+00> : vector<192xf32>
    %9 = vector.multi_reduction <add>, %8, %cst [0, 1] : vector<3x7x192xf32> to vector<192xf32>
    %10 = vector.shape_cast %9 : vector<192xf32> to vector<1x1x192xf32>
    %cst_6 = arith.constant 3.10019859E-5 : f32
    %11 = vector.broadcast %cst_6 : f32 to vector<1x1x192xf32>
    %12 = arith.mulf %10, %11 : vector<1x1x192xf32>
    %13 = arith.addf %7, %12 : vector<1x1x192xf32>
    %c0_7 = arith.constant 0 : index
    %c0_8 = arith.constant 0 : index
    %c0_9 = arith.constant 0 : index
    %14 = vector.load %arg4[%c0_7, %c0_8, %c0_9] : memref<1x1x192xf32, #tpu.memory_space<vmem>>, vector<1x1x192xf32>
    tpu.vector_store %arg4[%c0_7, %c0_8, %c0_9], %13 {strides = array<i32>} : memref<1x1x192xf32, #tpu.memory_space<vmem>>, vector<1x1x192xf32>,
    %15 = vector.extract_strided_slice %3 {offsets = [0, 0, 16], sizes = [3, 8, 176], strides = [1, 1, 1]} : vector<3x8x192xf32> to vector<3x8x176xf32>
    %16 = vector.extract_strided_slice %3 {offsets = [0, 0, 0], sizes = [3, 8, 176], strides = [1, 1, 1]} : vector<3x8x192xf32> to vector<3x8x176xf32>
    %17 = arith.subf %15, %16 : vector<3x8x176xf32>
    %c0_10 = arith.constant 0 : index
    %c0_11 = arith.constant 0 : index
    %c0_12 = arith.constant 0 : index
    %18 = vector.load %arg4[%c0_10, %c0_11, %c0_12] : memref<1x1x192xf32, #tpu.memory_space<vmem>>, vector<1x1x176xf32>
    %19 = arith.mulf %17, %17 : vector<3x8x176xf32>
    %cst_13 = arith.constant dense<0.000000e+00> : vector<176xf32>
    %20 = vector.multi_reduction <add>, %19, %cst_13 [0, 1] : vector<3x8x176xf32> to vector<176xf32>
    %21 = vector.shape_cast %20 : vector<176xf32> to vector<1x1x176xf32>
    %cst_14 = arith.constant 2.95928039E-5 : f32
    %22 = vector.broadcast %cst_14 : f32 to vector<1x1x176xf32>
    %23 = arith.mulf %21, %22 : vector<1x1x176xf32>
    %24 = arith.addf %18, %23 : vector<1x1x176xf32>
    %c0_15 = arith.constant 0 : index
    %c0_16 = arith.constant 0 : index
    %c0_17 = arith.constant 0 : index
    %25 = vector.load %arg4[%c0_15, %c0_16, %c0_17] : memref<1x1x192xf32, #tpu.memory_space<vmem>>, vector<1x1x176xf32>
    tpu.vector_store %arg4[%c0_15, %c0_16, %c0_17], %24 {strides = array<i32>} : memref<1x1x192xf32, #tpu.memory_space<vmem>>, vector<1x1x176xf32>,
    %26 = vector.extract_strided_slice %3 {offsets = [0, 0, 1], sizes = [3, 8, 191], strides = [1, 1, 1]} : vector<3x8x192xf32> to vector<3x8x191xf32>
    %27 = vector.extract_strided_slice %3 {offsets = [0, 0, 0], sizes = [3, 8, 191], strides = [1, 1, 1]} : vector<3x8x192xf32> to vector<3x8x191xf32>
    %28 = arith.subf %26, %27 : vector<3x8x191xf32>
    %c0_18 = arith.constant 0 : index
    %c0_19 = arith.constant 0 : index
    %c0_20 = arith.constant 0 : index
    %29 = vector.load %arg4[%c0_18, %c0_19, %c0_20] : memref<1x1x192xf32, #tpu.memory_space<vmem>>, vector<1x1x191xf32>
    %30 = arith.mulf %28, %28 : vector<3x8x191xf32>
    %cst_21 = arith.constant dense<0.000000e+00> : vector<191xf32>
    %31 = vector.multi_reduction <add>, %30, %cst_21 [0, 1] : vector<3x8x191xf32> to vector<191xf32>
    %32 = vector.shape_cast %31 : vector<191xf32> to vector<1x1x191xf32>
    %c0_22 = arith.constant 0 : index
    %c0_23 = arith.constant 0 : index
    %c0_24 = arith.constant 0 : index
    %33 = vector.load %arg3[%c0_22, %c0_23, %c0_24] : memref<1x1x191xf32, #tpu.memory_space<vmem>>, vector<1x1x191xf32>
    %34 = arith.mulf %32, %33 : vector<1x1x191xf32>
    %35 = arith.addf %29, %34 : vector<1x1x191xf32>
    %c0_25 = arith.constant 0 : index
    %c0_26 = arith.constant 0 : index
    %c0_27 = arith.constant 0 : index
    %36 = vector.load %arg4[%c0_25, %c0_26, %c0_27] : memref<1x1x192xf32, #tpu.memory_space<vmem>>, vector<1x1x191xf32>
    tpu.vector_store %arg4[%c0_25, %c0_26, %c0_27], %35 {strides = array<i32>} : memref<1x1x192xf32, #tpu.memory_space<vmem>>, vector<1x1x191xf32>,
    return
  }
  func.func @transform_0(%arg0: i32, %arg1: i32) -> (i32, i32, i32) {
    %c1_i32 = arith.constant 1 : i32
    %0 = arith.muli %arg0, %c1_i32 : i32
    %1 = arith.addi %0, %arg1 : i32
    %c0_i32 = arith.constant 0 : i32
    %c0_i32_0 = arith.constant 0 : i32
    %c0_i32_1 = arith.constant 0 : i32
    return %1, %c0_i32, %c0_i32_0 : i32, i32, i32
  }
  func.func @transform_1(%arg0: i32, %arg1: i32) -> (i32, i32, i32) {
    %c0_i32 = arith.constant 0 : i32
    %c0_i32_0 = arith.constant 0 : i32
    %c0_i32_1 = arith.constant 0 : i32
    %c0_i32_2 = arith.constant 0 : i32
    return %c0_i32, %c0_i32_0, %c0_i32_1 : i32, i32, i32
  }
  func.func @transform_2(%arg0: i32, %arg1: i32) -> (i32, i32, i32) {
    %c0_i32 = arith.constant 0 : i32
    %c0_i32_0 = arith.constant 0 : i32
    %c0_i32_1 = arith.constant 0 : i32
    return %arg0, %c0_i32, %c0_i32_0 : i32, i32, i32
  }
}

</mosaic_0001>

<llo_original>
// kernel: tpu_custom_call.1
$region0: #{tpu_custom_call.1}
  #allocation0 [shape = 'u32[]', space=smem, size = 0x4, offset = 0x4, fixed_abs, tag = 'smem constant byte address 0x4 - core index']
  #allocation1 [shape = 'u32[144,128]{1,0:T(1,128)}', space=vmem, size = 0x12000, scoped, tag = 'internal scratch']
  %s0 = inlined_call_operand.hbm [shape: f32[6,8,192], index: 0, kind: input, shape index: {}]
  %s1 = inlined_call_operand.hbm [shape: f32[1,1,191], index: 1, kind: input, shape index: {}]
  %s2 = inlined_call_operand.hbm [shape: f32[2,1,192], index: 2, kind: output, shape index: {}]
  %s3 = sld [smem:[#allocation0]]
  $region53: #{tpu_custom_call.1} parent=0
    _
  %s5 = ssub.s32 1, %s3
  %s6 = scalar_select 0, %s5, %s3
  $region1: #{tpu_custom_call.1} parent=0
    #allocation2 [shape = 'u8[49152]{0}', space=vmem, size = 0xc000, scoped, tag = 'input window, operand 0']
    #allocation3 [shape = 's32[2]{0}', space=sflag, size = 0x8, scoped, tag = 'scoped memory for tpu_custom_call.1']
    #allocation4 [shape = 's32[2]{0}', space=sflag, size = 0x8, scoped, tag = 'scoped memory for tpu_custom_call.1']
    #allocation5 [shape = 'u8[1024]{0}', space=vmem, size = 0x400, scoped, tag = 'input window, operand 1, single buffered']
    #allocation6 [shape = 's32[1]{0}', space=sflag, size = 0x4, scoped, tag = 'scoped memory for tpu_custom_call.1']
    #allocation7 [shape = 'u8[2048]{0}', space=vmem, size = 0x800, scoped, tag = 'output window, operand 0']
    %7 = vsyncpa [#allocation3], 0
    %s8 = scalar_lea.sflag [#allocation3], 1
    %9 = vsyncpa %s8, 0
    %10 = vsyncpa [#allocation6], 0
    %11 = vsyncpa [#allocation4], 0
    %s12 = scalar_lea.sflag [#allocation4], 1
    %13 = vsyncpa %s12, 0
    loop: start=0, step=1, limit=4
    $region2: #{tpu_custom_call.1} parent=1 // loop_pre_header
      _
    $region3: #{tpu_custom_call.1} parent=1 // loop_header
      %s15 = sphi 0, %s19
      %p16 = scmp.ge.s32.totalorder %s15, 4
      %s22 = sphi 0, %s34
      %s23 = sphi 0, %s30
      %s24 = sphi 0, %s22
      %s25 = sphi 0, %s23
      %s26 = sphi 0, %s24
      %s27 = sphi 0, %s25
      %s39 = sphi 0, %s41
      %s42 = sphi 0, %s39
      %s43 = sphi 0, %s42
      %s59 = sphi 0, %s43
      %s63 = sphi 0, %s63
      %s65 = sphi 0, %s63
      %s66 = sphi 0, %s65
      %s80 = sphi 0, %s66
      %s86 = sphi 0, %s88
      %s89 = sphi 0, %s86
      %s90 = sphi 0, %s89
      %s106 = sphi 0, %s90
    $region4: #{tpu_custom_call.1} parent=1 // loop_header_branch
      %18 = sbr.rel (%p16) target = $region8
    $region5: #{tpu_custom_call.1} parent=1 // loop_body
      %s20 = ssub.s32 %s15, 1
      %s21 = ssub.s32 %s15, 2
      %s28 = sadd.s32 1, %s23
      %p29 = scmp.ge.s32.totalorder %s28, 1
      %s30 = scalar_select %p29, 0, %s28
      %s31 = sadd.s32 1, %s22
      %s32 = scalar_select %p29, %s31, %s22
      %p33 = scmp.ge.s32.totalorder %s32, 2
      %s34 = scalar_select %p33, 0, %s32
      %s35 = sadd.s32 %s22, %s23
      %s36 = sadd.s32 %s34, %s30
      %s37 = ssub.s32 %s35, %s36
      %p38 = scmp.eq.s32.totalorder %s37, 0
      %s40 = sadd.s32 %s39, 1
      %s41 = scalar_select %p38, %s39, %s40
      %p44 = pneg %p38
      %p45 = scmp.eq.s32.totalorder %s15, 1
      %p46 = por %p44, %p45
      %p47 = scmp.ne.s32.totalorder %s39, %s42
      %p48 = scmp.eq.s32.totalorder %s15, 0
      %p49 = por %p47, %p48
      %p50 = scmp.ne.s32.totalorder %s39, %s42
      %p51 = scmp.eq.s32.totalorder %s20, 1
      %p52 = por %p50, %p51
      %p53 = scmp.ne.s32.totalorder %s42, %s43
      %p54 = scmp.eq.s32.totalorder %s20, 0
      %p55 = por %p53, %p54
      %p56 = scmp.ne.s32.totalorder %s42, %s43
      %p57 = scmp.eq.s32.totalorder %s21, 1
      %p58 = por %p56, %p57
      %p60 = scmp.ne.s32.totalorder %s43, %s59
      %p61 = scmp.eq.s32.totalorder %s21, 0
      %p62 = por %p60, %p61
      %s64 = sadd.s32 %s63, 1
      %p67 = scmp.eq.s32.totalorder %s15, 1
      %p68 = scmp.ne.s32.totalorder %s63, %s65
      %p69 = scmp.eq.s32.totalorder %s15, 0
      %p70 = por %p68, %p69
      %p71 = scmp.ne.s32.totalorder %s63, %s65
      %p72 = scmp.eq.s32.totalorder %s20, 1
      %p73 = por %p71, %p72
      %p74 = scmp.ne.s32.totalorder %s65, %s66
      %p75 = scmp.eq.s32.totalorder %s20, 0
      %p76 = por %p74, %p75
      %p77 = scmp.ne.s32.totalorder %s65, %s66
      %p78 = scmp.eq.s32.totalorder %s21, 1
      %p79 = por %p77, %p78
      %p81 = scmp.ne.s32.totalorder %s66, %s80
      %p82 = scmp.eq.s32.totalorder %s21, 0
      %p83 = por %p81, %p82
      %s84 = ssub.s32 %s22, %s34
      %p85 = scmp.eq.s32.totalorder %s84, 0
      %s87 = sadd.s32 %s86, 1
      %s88 = scalar_select %p85, %s86, %s87
      %p91 = pneg %p85
      %p92 = scmp.eq.s32.totalorder %s15, 1
      %p93 = por %p91, %p92
      %p94 = scmp.ne.s32.totalorder %s86, %s89
      %p95 = scmp.eq.s32.totalorder %s15, 0
      %p96 = por %p94, %p95
      %p97 = scmp.ne.s32.totalorder %s86, %s89
      %p98 = scmp.eq.s32.totalorder %s20, 1
      %p99 = por %p97, %p98
      %p100 = scmp.ne.s32.totalorder %s89, %s90
      %p101 = scmp.eq.s32.totalorder %s20, 0
      %p102 = por %p100, %p101
      %p103 = scmp.ne.s32.totalorder %s89, %s90
      %p104 = scmp.eq.s32.totalorder %s21, 1
      %p105 = por %p103, %p104
      %p107 = scmp.ne.s32.totalorder %s90, %s106
      %p108 = scmp.eq.s32.totalorder %s21, 0
      %p109 = por %p107, %p108
      %p110 = scmp.le.s32.totalorder 1, %s15
      %p111 = scmp.lt.s32.totalorder %s15, 3
      %p112 = pnand %p110, %p111
      %p113 = pneg %p112
      // Predicated region
      $region9: #{tpu_custom_call.1} parent=5 // pred_check
        _
      $region10: #{tpu_custom_call.1} parent=5 // pred_check_branch
        %115 = sbr.rel (%p112) target = $region12
      $region11: #{tpu_custom_call.1} parent=5 // pred_region
        %s116 = ssub.s32 %s15, 1
        // Predicated region
        $region13: #{tpu_custom_call.1} parent=11 // pred_check
          %p117 = pneg %p76
        $region14: #{tpu_custom_call.1} parent=11 // pred_check_branch
          %119 = sbr.rel (%p117) target = $region16
        $region15: #{tpu_custom_call.1} parent=11 // pred_region
          %s121 = ssub.s32 32, 32
          %122 = vsyncadd [#allocation6], %s121
          %s124 = sshll.u32 [#allocation5], 4
          %s125 = int_to_ptr.vmem [resolvable:$true] %s124
          %127 = dma.hbm_to_vmem [thread:$0]  %s1, 32, %s125, [#allocation6]
        $region16: #{tpu_custom_call.1} parent=11 // pred_fallthru
          _
      $region12: #{tpu_custom_call.1} parent=5 // pred_fallthru
        _
      %p128 = scmp.lt.s32.totalorder %s15, 2
      // Predicated region
      $region17: #{tpu_custom_call.1} parent=5 // pred_check
        %p129 = pneg %p128
      $region18: #{tpu_custom_call.1} parent=5 // pred_check_branch
        %131 = sbr.rel (%p129) target = $region20
      $region19: #{tpu_custom_call.1} parent=5 // pred_region
        // Predicated region
        $region21: #{tpu_custom_call.1} parent=19 // pred_check
          %p132 = pneg %p49
        $region22: #{tpu_custom_call.1} parent=19 // pred_check_branch
          %134 = sbr.rel (%p132) target = $region24
        $region23: #{tpu_custom_call.1} parent=19 // pred_region
          %s135 = sand.u32 %s39, 1
          %s136 = scalar_lea.sflag [#allocation3], %s135
          %s137 = sand.u32 %s39, 1
          %s138 = smul.addr %s137, 48
          %s139 = scalar_lea.vmem [#allocation2], %s138
          %s140 = sadd.s32 %s22, %s23
          %s141 = smul.u32 3, %s140
          %s143 = ssub.s32 768, 768
          %144 = vsyncadd %s136, %s143
          %s145 = smul.addr %s141, 2
          %s146 = smul.addr %s145, 128
          %s147 = scalar_lea.hbm %s0, %s146
          %s148 = sshll.u32 %s139, 4
          %s149 = int_to_ptr.vmem [resolvable:$true] %s148
          %154 = dma.hbm_to_vmem [thread:$0]  %s147, 768, %s149, %s136, 256, 256, 16
        $region24: #{tpu_custom_call.1} parent=19 // pred_fallthru
          _
      $region20: #{tpu_custom_call.1} parent=5 // pred_fallthru
        _
      %p155 = scmp.le.s32.totalorder 1, %s15
      %p156 = scmp.lt.s32.totalorder %s15, 3
      %p157 = pnand %p155, %p156
      %p158 = pneg %p157
      // Predicated region
      $region25: #{tpu_custom_call.1} parent=5 // pred_check
        _
      $region26: #{tpu_custom_call.1} parent=5 // pred_check_branch
        %160 = sbr.rel (%p157) target = $region28
      $region27: #{tpu_custom_call.1} parent=5 // pred_region
        %s161 = ssub.s32 %s15, 1
        %s162 = sand.u32 %s42, 1
        %s163 = scalar_lea.sflag [#allocation3], %s162
        %s164 = sand.u32 %s42, 1
        %s165 = smul.addr %s164, 48
        %s166 = scalar_lea.vmem [#allocation2], %s165
        // Predicated region
        $region29: #{tpu_custom_call.1} parent=27 // pred_check
          %p167 = pneg %p55
        $region30: #{tpu_custom_call.1} parent=27 // pred_check_branch
          %169 = sbr.rel (%p167) target = $region32
        $region31: #{tpu_custom_call.1} parent=27 // pred_region
          %170 = dma.done %s163, 768
        $region32: #{tpu_custom_call.1} parent=27 // pred_fallthru
          _
        // Predicated region
        $region33: #{tpu_custom_call.1} parent=27 // pred_check
          %p171 = pneg %p76
        $region34: #{tpu_custom_call.1} parent=27 // pred_check_branch
          %173 = sbr.rel (%p171) target = $region36
        $region35: #{tpu_custom_call.1} parent=27 // pred_region
          %174 = dma.done [#allocation6], 32
        $region36: #{tpu_custom_call.1} parent=27 // pred_fallthru
          _
        %s175 = sand.u32 %s42, 1
        %s176 = scalar_lea.sflag [#allocation3], %s175
        %s177 = sand.u32 %s42, 1
        %s178 = smul.addr %s177, 48
        %s179 = scalar_lea.vmem [#allocation2], %s178
        %p180 = pneg %p55
        %p181 = pneg %p52
        %p182 = pneg %p76
        %p183 = pneg %p73
        %p184 = pneg %p102
        %p185 = pneg %p99
        %s186 = sand.u32 %s89, 1
        %s187 = scalar_lea.sflag [#allocation4], %s186
        %s188 = sand.u32 %s89, 1
        %s189 = smul.addr %s188, 2
        %s190 = scalar_lea.vmem [#allocation7], %s189
        %s191 = sadd.s32 %s24, %s25
        %s192 = smul.u32 3, %s191
        %p193 = scmp.eq.s32.totalorder %s25, 0
        // Predicated region
        $region37: #{tpu_custom_call.1} parent=27 // pred_check
          %p194 = pneg %p193
        $region38: #{tpu_custom_call.1} parent=27 // pred_check_branch
          %196 = sbr.rel (%p194) target = $region40
        $region39: #{tpu_custom_call.1} parent=27 // pred_region
          %v197 = vlaneseq
          %vm198 = vcmp.ge.s32.totalorder %v197, 0
          %vm199 = vcmp.lt.s32.totalorder %v197, 192
          %vm200 = vmand %vm198, %vm199
          %201 = vst.msk [vmem:[%s190] sm:$0x3] %vm200, 0.0
        $region40: #{tpu_custom_call.1} parent=27 // pred_fallthru
          _
        %v202 = vld [vmem:[%s166] sm:$0xff]
        %v203 = vld [vmem:[%s166 + $0x8] sm:$0xff]
        %v204 = vld [vmem:[%s166 + $0x10] sm:$0xff]
        %v205 = vld [vmem:[%s166 + $0x18] sm:$0xff]
        %v206 = vld [vmem:[%s166 + $0x20] sm:$0xff]
        %v207 = vld [vmem:[%s166 + $0x28] sm:$0xff]
        %v214 = vrot.slane %v202, 7
        %v215 = vrot.slane %v203, 7
        %v216 = vrot.slane %v204, 7
        %v217 = vrot.slane %v205, 7
        %v218 = vrot.slane %v206, 7
        %v219 = vrot.slane %v207, 7
        %v226 = vsub.f32 %v202, %v214
        %v227 = vsub.f32 %v203, %v215
        %v228 = vsub.f32 %v204, %v216
        %v229 = vsub.f32 %v205, %v217
        %v230 = vsub.f32 %v206, %v218
        %v231 = vsub.f32 %v207, %v219
        %v232 = vld [vmem:[%s190] sm:$0x3]
        %v233 = vmul.f32 %v226, %v226
        %v234 = vmul.f32 %v227, %v227
        %v235 = vmul.f32 %v228, %v228
        %v236 = vmul.f32 %v229, %v229
        %v237 = vmul.f32 %v230, %v230
        %v238 = vmul.f32 %v231, %v231
        %v245 = vrot.slane %v233, 1
        %v246 = vrot.slane %v234, 1
        %v247 = vrot.slane %v235, 1
        %v248 = vrot.slane %v236, 1
        %v249 = vrot.slane %v237, 1
        %v250 = vrot.slane %v238, 1
        %vm257 = vcmask 1046528
        %v258 = vsel %vm257, %v245, 0.0
        %v259 = vsel %vm257, %v247, 0.0
        %v260 = vadd.f32 %v258, %v259
        %v261 = vsel %vm257, %v249, 0.0
        %v262 = vadd.f32 %v260, %v261
        %v263 = vrot.slane %v262, 4
        %v264 = vadd.f32 %v262, %v263
        %v265 = vrot.slane %v264, 2
        %v266 = vadd.f32 %v264, %v265
        %v267 = vrot.slane %v266, 1
        %v268 = vadd.f32 %v266, %v267
        %vm269 = vcmask 522240
        %v270 = vsel %vm269, %v246, 0.0
        %v271 = vsel %vm269, %v248, 0.0
        %v272 = vadd.f32 %v270, %v271
        %v273 = vsel %vm269, %v250, 0.0
        %v274 = vadd.f32 %v272, %v273
        %v275 = vrot.slane %v274, 4
        %v276 = vadd.f32 %v274, %v275
        %v277 = vrot.slane %v276, 2
        %v278 = vadd.f32 %v276, %v277
        %v279 = vrot.slane %v278, 1
        %v280 = vadd.f32 %v278, %v279
        %v281 = vmul.f32 %v268, 3.1001986e-05
        %v282 = vmul.f32 %v280, 3.1001986e-05
        %v285 = vcombine.low %v281, %v282
        %v287 = vunpack.c.l.s4 1966171168
        %v288 = vunpack.c.0.s8 %v287
        %v289 = vlaneseq
        %v290 = vshrl.u32 %v289, 7
        %v291 = vsub.s32 %v288, %v290
        %v292 = vrot.slane %v285, %v291
        %v294 = vunpack.c.l.s4 1966171168
        %v295 = vunpack.c.0.s8 %v294
        %v296 = vlaneseq
        %v297 = vshrl.u32 %v296, 7
        %v298 = vsub.s32 %v295, %v297
        %v299 = vrot.slane %v292, %v298
        %v301 = vadd.f32 %v232, %v299
        %v302 = vlaneseq
        %vm303 = vcmp.ge.s32.totalorder %v302, 0
        %vm304 = vcmp.lt.s32.totalorder %v302, 192
        %vm305 = vmand %vm303, %vm304
        %306 = vst.msk [vmem:[%s190] sm:$0x3] %vm305, %v301
        %307 = vrot.lane.b32.xlu0 %v202, 16
        %v308 = vpop.permute.xlu0 %307
        %309 = vrot.lane.b32.xlu0 %v203, 16
        %v310 = vpop.permute.xlu0 %309
        %311 = vrot.lane.b32.xlu0 %v204, 16
        %v312 = vpop.permute.xlu0 %311
        %313 = vrot.lane.b32.xlu0 %v205, 16
        %v314 = vpop.permute.xlu0 %313
        %315 = vrot.lane.b32.xlu0 %v206, 16
        %v316 = vpop.permute.xlu0 %315
        %317 = vrot.lane.b32.xlu0 %v207, 16
        %v318 = vpop.permute.xlu0 %317
        %vm319 = vcmask 130048
        %v320 = vsel %vm319, %v308, %v310
        %v321 = vsel %vm319, %v312, %v314
        %v322 = vsel %vm319, %v316, %v318
        %v329 = vsub.f32 %v202, %v308
        %v330 = vsub.f32 %v203, %v320
        %v331 = vsub.f32 %v204, %v312
        %v332 = vsub.f32 %v205, %v321
        %v333 = vsub.f32 %v206, %v316
        %v334 = vsub.f32 %v207, %v322
        %v335 = vld [vmem:[%s190] sm:$0x3]
        %v336 = vmul.f32 %v329, %v329
        %v337 = vmul.f32 %v330, %v330
        %v338 = vmul.f32 %v331, %v331
        %v339 = vmul.f32 %v332, %v332
        %v340 = vmul.f32 %v333, %v333
        %v341 = vmul.f32 %v334, %v334
        %vm342 = vcmask 1047680
        %v343 = vsel %vm342, %v336, 0.0
        %v344 = vsel %vm342, %v338, 0.0
        %v345 = vadd.f32 %v343, %v344
        %v346 = vsel %vm342, %v340, 0.0
        %v347 = vadd.f32 %v345, %v346
        %v348 = vrot.slane %v347, 4
        %v349 = vadd.f32 %v347, %v348
        %v350 = vrot.slane %v349, 2
        %v351 = vadd.f32 %v349, %v350
        %v352 = vrot.slane %v351, 1
        %v353 = vadd.f32 %v351, %v352
        %vm354 = vcmask 523264
        %v355 = vsel %vm354, %v337, 0.0
        %v356 = vsel %vm354, %v339, 0.0
        %v357 = vadd.f32 %v355, %v356
        %v358 = vsel %vm354, %v341, 0.0
        %v359 = vadd.f32 %v357, %v358
        %v360 = vrot.slane %v359, 4
        %v361 = vadd.f32 %v359, %v360
        %v362 = vrot.slane %v361, 2
        %v363 = vadd.f32 %v361, %v362
        %v364 = vrot.slane %v363, 1
        %v365 = vadd.f32 %v363, %v364
        %v366 = vmul.f32 %v353, 2.9592804e-05
        %v367 = vmul.f32 %v365, 2.9592804e-05
        %v370 = vcombine.low %v366, %v367
        %v372 = vunpack.c.l.s4 1966171168
        %v373 = vunpack.c.0.s8 %v372
        %v374 = vlaneseq
        %v375 = vshrl.u32 %v374, 7
        %v376 = vsub.s32 %v373, %v375
        %v377 = vrot.slane %v370, %v376
        %v379 = vunpack.c.l.s4 1966171168
        %v380 = vunpack.c.0.s8 %v379
        %v381 = vlaneseq
        %v382 = vshrl.u32 %v381, 7
        %v383 = vsub.s32 %v380, %v382
        %v384 = vrot.slane %v377, %v383
        %385 = vrot.lane.b32.xlu0 %v384, 112
        %v386 = vpop.permute.xlu0 %385
        %v387 = vrot.slane %v386, 1
        %vm388 = vcmask 916480
        %v389 = vsel %vm388, %v386, %v387
        %v391 = vadd.f32 %v335, %v389
        %vm392 = vcmp.lt.s32.totalorder %v302, 176
        %vm393 = vmand %vm303, %vm392
        %394 = vst.msk [vmem:[%s190] sm:$0x3] %vm393, %v391
        %395 = vrot.lane.b32.xlu0 %v202, 1
        %v396 = vpop.permute.xlu0 %395
        %397 = vrot.lane.b32.xlu0 %v203, 1
        %v398 = vpop.permute.xlu0 %397
        %399 = vrot.lane.b32.xlu0 %v204, 1
        %v400 = vpop.permute.xlu0 %399
        %401 = vrot.lane.b32.xlu0 %v205, 1
        %v402 = vpop.permute.xlu0 %401
        %403 = vrot.lane.b32.xlu0 %v206, 1
        %v404 = vpop.permute.xlu0 %403
        %405 = vrot.lane.b32.xlu0 %v207, 1
        %v406 = vpop.permute.xlu0 %405
        %vm407 = vcmask 7168
        %v408 = vsel %vm407, %v396, %v398
        %v409 = vsel %vm407, %v400, %v402
        %v410 = vsel %vm407, %v404, %v406
        %v417 = vsub.f32 %v202, %v396
        %v418 = vsub.f32 %v203, %v408
        %v419 = vsub.f32 %v204, %v400
        %v420 = vsub.f32 %v205, %v409
        %v421 = vsub.f32 %v206, %v404
        %v422 = vsub.f32 %v207, %v410
        %v423 = vld [vmem:[%s190] sm:$0x3]
        %v424 = vmul.f32 %v417, %v417
        %v425 = vmul.f32 %v418, %v418
        %v426 = vmul.f32 %v419, %v419
        %v427 = vmul.f32 %v420, %v420
        %v428 = vmul.f32 %v421, %v421
        %v429 = vmul.f32 %v422, %v422
        %vm430 = vcmask 1047560
        %v431 = vsel %vm430, %v424, 0.0
        %v432 = vsel %vm430, %v426, 0.0
        %v433 = vadd.f32 %v431, %v432
        %v434 = vsel %vm430, %v428, 0.0
        %v435 = vadd.f32 %v433, %v434
        %v436 = vrot.slane %v435, 4
        %v437 = vadd.f32 %v435, %v436
        %v438 = vrot.slane %v437, 2
        %v439 = vadd.f32 %v437, %v438
        %v440 = vrot.slane %v439, 1
        %v441 = vadd.f32 %v439, %v440
        %v442 = vsel %vm354, %v425, 0.0
        %v443 = vsel %vm354, %v427, 0.0
        %v444 = vadd.f32 %v442, %v443
        %v445 = vsel %vm354, %v429, 0.0
        %v446 = vadd.f32 %v444, %v445
        %v447 = vrot.slane %v446, 4
        %v448 = vadd.f32 %v446, %v447
        %v449 = vrot.slane %v448, 2
        %v450 = vadd.f32 %v448, %v449
        %v451 = vrot.slane %v450, 1
        %v452 = vadd.f32 %v450, %v451
        %v453 = vld [vmem:[#allocation5] sm:$0x3]
        %v455 = vlaneseq
        %v456 = vshrl.u32 %v455, 7
        %v457 = vsub.s32 0, %v456
        %v458 = vrot.slane %v453, %v457
        %v459 = vlaneseq
        %v460 = vshrl.u32 %v459, 7
        %v461 = vsub.s32 1, %v460
        %v462 = vrot.slane %v453, %v461
        %463 = vrot.lane.b32.xlu0 %v458, 1
        %v464 = vpop.permute.xlu0 %463
        %465 = vrot.lane.b32.xlu0 %v462, 1
        %v466 = vpop.permute.xlu0 %465
        %v467 = vsel %vm407, %v464, %v466
        %v470 = vmul.f32 %v441, %v464
        %v471 = vmul.f32 %v452, %v467
        %v474 = vcombine.low %v470, %v471
        %v476 = vunpack.c.l.s4 1966171168
        %v477 = vunpack.c.0.s8 %v476
        %v478 = vlaneseq
        %v479 = vshrl.u32 %v478, 7
        %v480 = vsub.s32 %v477, %v479
        %v481 = vrot.slane %v474, %v480
        %v483 = vunpack.c.l.s4 1966171168
        %v484 = vunpack.c.0.s8 %v483
        %v485 = vlaneseq
        %v486 = vshrl.u32 %v485, 7
        %v487 = vsub.s32 %v484, %v486
        %v488 = vrot.slane %v481, %v487
        %489 = vrot.lane.b32.xlu0 %v488, 127
        %v490 = vpop.permute.xlu0 %489
        %v491 = vrot.slane %v490, 1
        %vm492 = vcmask 1039360
        %v493 = vsel %vm492, %v490, %v491
        %v495 = vadd.f32 %v423, %v493
        %vm496 = vcmp.lt.s32.totalorder %v302, 191
        %vm497 = vmand %vm303, %vm496
        %498 = vst.msk [vmem:[%s190] sm:$0x3] %vm497, %v495
        %s499 = sand.u32 %s89, 1
        %s500 = scalar_lea.sflag [#allocation4], %s499
        %s501 = sand.u32 %s89, 1
        %s502 = smul.addr %s501, 2
        %s503 = scalar_lea.vmem [#allocation7], %s502
        // Predicated region
        $region41: #{tpu_custom_call.1} parent=27 // pred_check
          %p504 = pneg %p99
        $region42: #{tpu_custom_call.1} parent=27 // pred_check_branch
          %506 = sbr.rel (%p504) target = $region44
        $region43: #{tpu_custom_call.1} parent=27 // pred_region
          %s508 = ssub.s32 32, 32
          %509 = vsyncadd %s500, %s508
          %s510 = smul.addr %s24, 2
          %s511 = smul.addr %s510, 16
          %s512 = scalar_lea.hbm %s2, %s511
          %s514 = sshll.u32 %s503, 4
          %s515 = int_to_ptr.vmem [resolvable:$true] %s514
          %517 = dma.vmem_to_hbm [thread:$0]  %s515, 32, %s512, %s500
        $region44: #{tpu_custom_call.1} parent=27 // pred_fallthru
          _
      $region28: #{tpu_custom_call.1} parent=5 // pred_fallthru
        _
      %p518 = scmp.le.s32.totalorder 2, %s15
      // Predicated region
      $region45: #{tpu_custom_call.1} parent=5 // pred_check
        %p519 = pneg %p518
      $region46: #{tpu_custom_call.1} parent=5 // pred_check_branch
        %521 = sbr.rel (%p519) target = $region48
      $region47: #{tpu_custom_call.1} parent=5 // pred_region
        %s522 = ssub.s32 %s15, 2
        // Predicated region
        $region49: #{tpu_custom_call.1} parent=47 // pred_check
          %p523 = pneg %p105
        $region50: #{tpu_custom_call.1} parent=47 // pred_check_branch
          %525 = sbr.rel (%p523) target = $region52
        $region51: #{tpu_custom_call.1} parent=47 // pred_region
          %s526 = sand.u32 %s90, 1
          %s527 = scalar_lea.sflag [#allocation4], %s526
          %s528 = sand.u32 %s90, 1
          %s529 = smul.addr %s528, 2
          %s530 = scalar_lea.vmem [#allocation7], %s529
          %531 = dma.done %s527, 32
        $region52: #{tpu_custom_call.1} parent=47 // pred_fallthru
          _
      $region48: #{tpu_custom_call.1} parent=5 // pred_fallthru
        _
    $region6: #{tpu_custom_call.1} parent=1 // loop_footer
      %s19 = sadd.s32 1, %s15
    $region7: #{tpu_custom_call.1} parent=1 // loop_footer_branch
      %14 = sbr.rel target = $region3
    $region8: #{tpu_custom_call.1} parent=1 // loop_exit
      _
    %532 = vsyncpa [#allocation3], 1
    %s533 = scalar_lea.sflag [#allocation3], 1
    %534 = vsyncpa %s533, 1
    %535 = vsyncpa [#allocation6], 1
    %536 = vsyncpa [#allocation4], 1
    %s537 = scalar_lea.sflag [#allocation4], 1
    %538 = vsyncpa %s537, 1

</llo_original>
